<compile_context>
chip_gen: v7x
topology: tpu7x:2x2x1
jax: 0.10.0
libtpu: 0.0.40
codegen_flags: <defaults>
</compile_context>

<pallas_src>
import numpy as np
import jax
import jax.numpy as jnp
from jax.experimental import pallas as pl
from jax.experimental.pallas import tpu as pltpu


def get_positional_encoding_table(max_seq_len: int, hidden_dim: int):
    """JAX port of the reference sinusoidal PE table."""
    pos = np.arange(max_seq_len, dtype=np.float64)[:, None]
    i = np.arange(hidden_dim, dtype=np.float64)[None, :]
    angle = pos / np.power(10000.0, 2.0 * (i // 2) / hidden_dim)
    table = angle.astype(np.float32)
    table[:, 0::2] = np.sin(table[:, 0::2])
    table[:, 1::2] = np.cos(table[:, 1::2])
    return jnp.asarray(table)


def bert_embedding_kernel(tok_ids_ref, seg_ids_ref,               # SMEM (B, S) int32
                          tok_tab_hbm, seg_tab_hbm, pos_tab_hbm,  # HBM tables (ANY)
                          out_ref,                                # VMEM (S, H)
                          tok_buf, seg_buf, pos_buf,              # VMEM (S, H) scratch
                          tok_sem, seg_sem, pos_sem):             # DMA sems (S,)
    b = pl.program_id(0)
    S = out_ref.shape[0]

    # Issue every row-gather DMA for this batch element (3*S copies in flight).
    @pl.loop(0, S)
    def _issue(s):
        tid = tok_ids_ref[b, s]
        sid = seg_ids_ref[b, s]
        pltpu.make_async_copy(tok_tab_hbm.at[pl.ds(tid, 1)],
                              tok_buf.at[pl.ds(s, 1)], tok_sem.at[s]).start()
        # NOTE: positional table indexed by the *token id*, exactly as in the
        # reference forward (`self.pos_emb(input_tensor)`).
        pltpu.make_async_copy(pos_tab_hbm.at[pl.ds(tid, 1)],
                              pos_buf.at[pl.ds(s, 1)], pos_sem.at[s]).start()
        pltpu.make_async_copy(seg_tab_hbm.at[pl.ds(sid, 1)],
                              seg_buf.at[pl.ds(s, 1)], seg_sem.at[s]).start()

    # Wait for all of them (descriptor shapes match the ones started above).
    @pl.loop(0, S)
    def _wait(s):
        pltpu.make_async_copy(tok_tab_hbm.at[pl.ds(0, 1)],
                              tok_buf.at[pl.ds(s, 1)], tok_sem.at[s]).wait()
        pltpu.make_async_copy(pos_tab_hbm.at[pl.ds(0, 1)],
                              pos_buf.at[pl.ds(s, 1)], pos_sem.at[s]).wait()
        pltpu.make_async_copy(seg_tab_hbm.at[pl.ds(0, 1)],
                              seg_buf.at[pl.ds(s, 1)], seg_sem.at[s]).wait()

    # Single lane-dense (S, H) add + full-width store.
    out_ref[...] = tok_buf[...] + seg_buf[...] + pos_buf[...]


def bert_embedding(token_ids, segment_ids, tok_table, seg_table, pos_table):
    B, S = token_ids.shape
    _, H = tok_table.shape
    token_ids = token_ids.astype(jnp.int32)
    segment_ids = segment_ids.astype(jnp.int32)

    grid_spec = pltpu.PrefetchScalarGridSpec(
        num_scalar_prefetch=2,          # token ids + segment ids -> SMEM
        grid=(B,),
        in_specs=[
            pl.BlockSpec(memory_space=pl.ANY),   # token embedding table (stays in HBM)
            pl.BlockSpec(memory_space=pl.ANY),   # segment embedding table (stays in HBM)
            pl.BlockSpec(memory_space=pl.ANY),   # positional encoding table (stays in HBM)
        ],
        out_specs=pl.BlockSpec((None, S, H), lambda b, tok, seg: (b, 0, 0)),
        scratch_shapes=[
            pltpu.VMEM((S, H), tok_table.dtype),
            pltpu.VMEM((S, H), seg_table.dtype),
            pltpu.VMEM((S, H), pos_table.dtype),
            pltpu.SemaphoreType.DMA((S,)),
            pltpu.SemaphoreType.DMA((S,)),
            pltpu.SemaphoreType.DMA((S,)),
        ],
    )
    return pl.pallas_call(
        bert_embedding_kernel,
        out_shape=jax.ShapeDtypeStruct((B, S, H), tok_table.dtype),
        grid_spec=grid_spec,
        compiler_params=pltpu.CompilerParams(dimension_semantics=("parallel",)),
    )(token_ids, segment_ids, tok_table, seg_table, pos_table)


def bert_embedding_ref(token_ids, segment_ids, tok_table, seg_table, pos_table):
    """Pure-JAX reference (mirrors the PyTorch forward exactly)."""
    return tok_table[token_ids] + seg_table[segment_ids] + pos_table[token_ids]


if __name__ == "__main__":
    B, S, H = 2, 8, 32
    VOCAB, MAX_SEQ = 32, 32   # token ids < MAX_SEQ so pos_emb(input_tensor) is valid

    key = jax.random.PRNGKey(0)
    k_temb, k_semb, k_ids, k_sids = jax.random.split(key, 4)

    tok_table = jax.random.normal(k_temb, (VOCAB, H), dtype=jnp.float32) * 0.1
    seg_table = jax.random.normal(k_semb, (2, H), dtype=jnp.float32) * 0.1
    pos_table = get_positional_encoding_table(MAX_SEQ, H)

    token_ids = jax.random.randint(k_ids, (B, S), 0, VOCAB, dtype=jnp.int32)
    segment_ids = jax.random.randint(k_sids, (B, S), 0, 2, dtype=jnp.int32)

    out = bert_embedding(token_ids, segment_ids, tok_table, seg_table, pos_table)
    out = jax.block_until_ready(out)

    ref = bert_embedding_ref(token_ids, segment_ids, tok_table, seg_table, pos_table)
    assert out.shape == (B, S, H)
    assert jnp.allclose(out, ref, atol=1e-5, rtol=1e-5), "mismatch vs JAX reference"

    print("KERNEL_OK")
</pallas_src>

<mosaic_0001>
module attributes {stable_mosaic.version = 11 : i64} {
  func.func @bert_embedding_kernel(%arg0: i32, %arg1: memref<2x8xi32, #tpu.memory_space<smem>>, %arg2: memref<2x8xi32, #tpu.memory_space<smem>>, %arg3: memref<32x32xf32, #tpu.memory_space<any>>, %arg4: memref<2x32xf32, #tpu.memory_space<any>>, %arg5: memref<32x32xf32, #tpu.memory_space<any>>, %arg6: memref<1x8x32xf32, #tpu.memory_space<vmem>>, %arg7: memref<8x32xf32, #tpu.memory_space<vmem>>, %arg8: memref<8x32xf32, #tpu.memory_space<vmem>>, %arg9: memref<8x32xf32, #tpu.memory_space<vmem>>, %arg10: memref<8x!tpu.dma_semaphore, #tpu.memory_space<semaphore_mem>>, %arg11: memref<8x!tpu.dma_semaphore, #tpu.memory_space<semaphore_mem>>, %arg12: memref<8x!tpu.dma_semaphore, #tpu.memory_space<semaphore_mem>>) attributes {dimension_semantics = [#tpu.dimension_semantics<parallel>], iteration_bounds = array<i64: 2>, scalar_prefetch = 2 : i64, scratch_operands = 6 : i64, tpu.core_type = #tpu.core_type<tc>, window_params = [{}, {}, {}, {transform_indices = @transform_3, window_bounds = array<i64: 1, 8, 32>}]} {
    %c0_i32 = arith.constant 0 : i32
    %c8_i32 = arith.constant 8 : i32
    %0 = arith.addi %c0_i32, %c8_i32 : i32
    %c1_i32 = arith.constant 1 : i32
    scf.for %arg13 = %c0_i32 to %0 step %c1_i32  : i32 {
      %c1_i32_13 = arith.constant 1 : i32
      %10 = arith.muli %arg13, %c1_i32_13 : i32
      %c0_i32_14 = arith.constant 0 : i32
      %11 = arith.addi %c0_i32_14, %10 : i32
      %12 = arith.index_cast %arg0 : i32 to index
      %13 = arith.index_cast %11 : i32 to index
      %14 = memref.load %arg1[%12, %13] : memref<2x8xi32, #tpu.memory_space<smem>>
      %15 = arith.index_cast %arg0 : i32 to index
      %16 = arith.index_cast %11 : i32 to index
      %17 = memref.load %arg2[%15, %16] : memref<2x8xi32, #tpu.memory_space<smem>>
      %c0_i32_15 = arith.constant 0 : i32
      %18 = tpu.memref_slice %arg3[%14, %c0_i32_15] : memref<32x32xf32, #tpu.memory_space<any>> -> memref<1x32xf32, #tpu.memory_space<any>>
      %c0_i32_16 = arith.constant 0 : i32
      %19 = tpu.memref_slice %arg7[%11, %c0_i32_16] : memref<8x32xf32, #tpu.memory_space<vmem>> -> memref<1x32xf32, #tpu.memory_space<vmem>>
      %20 = tpu.memref_slice %arg10[%11] : memref<8x!tpu.dma_semaphore, #tpu.memory_space<semaphore_mem>> -> memref<1x!tpu.dma_semaphore, #tpu.memory_space<semaphore_mem>>
      %21 = tpu.memref_squeeze %20 : memref<1x!tpu.dma_semaphore, #tpu.memory_space<semaphore_mem>> -> memref<!tpu.dma_semaphore, #tpu.memory_space<semaphore_mem>>
      tpu.enqueue_dma source(%18 : memref<1x32xf32, #tpu.memory_space<any>>) target(%19 : memref<1x32xf32, #tpu.memory_space<vmem>>) target_semaphore(%21 : memref<!tpu.dma_semaphore, #tpu.memory_space<semaphore_mem>>)
      %c0_i32_17 = arith.constant 0 : i32
      %22 = tpu.memref_slice %arg5[%14, %c0_i32_17] : memref<32x32xf32, #tpu.memory_space<any>> -> memref<1x32xf32, #tpu.memory_space<any>>
      %c0_i32_18 = arith.constant 0 : i32
      %23 = tpu.memref_slice %arg9[%11, %c0_i32_18] : memref<8x32xf32, #tpu.memory_space<vmem>> -> memref<1x32xf32, #tpu.memory_space<vmem>>
      %24 = tpu.memref_slice %arg12[%11] : memref<8x!tpu.dma_semaphore, #tpu.memory_space<semaphore_mem>> -> memref<1x!tpu.dma_semaphore, #tpu.memory_space<semaphore_mem>>
      %25 = tpu.memref_squeeze %24 : memref<1x!tpu.dma_semaphore, #tpu.memory_space<semaphore_mem>> -> memref<!tpu.dma_semaphore, #tpu.memory_space<semaphore_mem>>
      tpu.enqueue_dma source(%22 : memref<1x32xf32, #tpu.memory_space<any>>) target(%23 : memref<1x32xf32, #tpu.memory_space<vmem>>) target_semaphore(%25 : memref<!tpu.dma_semaphore, #tpu.memory_space<semaphore_mem>>)
      %c0_i32_19 = arith.constant 0 : i32
      %26 = tpu.memref_slice %arg4[%17, %c0_i32_19] : memref<2x32xf32, #tpu.memory_space<any>> -> memref<1x32xf32, #tpu.memory_space<any>>
      %c0_i32_20 = arith.constant 0 : i32
      %27 = tpu.memref_slice %arg8[%11, %c0_i32_20] : memref<8x32xf32, #tpu.memory_space<vmem>> -> memref<1x32xf32, #tpu.memory_space<vmem>>
      %28 = tpu.memref_slice %arg11[%11] : memref<8x!tpu.dma_semaphore, #tpu.memory_space<semaphore_mem>> -> memref<1x!tpu.dma_semaphore, #tpu.memory_space<semaphore_mem>>
      %29 = tpu.memref_squeeze %28 : memref<1x!tpu.dma_semaphore, #tpu.memory_space<semaphore_mem>> -> memref<!tpu.dma_semaphore, #tpu.memory_space<semaphore_mem>>
      tpu.enqueue_dma source(%26 : memref<1x32xf32, #tpu.memory_space<any>>) target(%27 : memref<1x32xf32, #tpu.memory_space<vmem>>) target_semaphore(%29 : memref<!tpu.dma_semaphore, #tpu.memory_space<semaphore_mem>>)
    }
    %c8_i32_0 = arith.constant 8 : i32
    %c0_i32_1 = arith.constant 0 : i32
    %c8_i32_2 = arith.constant 8 : i32
    %1 = arith.addi %c0_i32_1, %c8_i32_2 : i32
    %c1_i32_3 = arith.constant 1 : i32
    scf.for %arg13 = %c0_i32_1 to %1 step %c1_i32_3  : i32 {
      %c1_i32_13 = arith.constant 1 : i32
      %10 = arith.muli %arg13, %c1_i32_13 : i32
      %c0_i32_14 = arith.constant 0 : i32
      %11 = arith.addi %c0_i32_14, %10 : i32
      %c0_i32_15 = arith.constant 0 : i32
      %c0_i32_16 = arith.constant 0 : i32
      %12 = tpu.memref_slice %arg3[%c0_i32_15, %c0_i32_16] : memref<32x32xf32, #tpu.memory_space<any>> -> memref<1x32xf32, #tpu.memory_space<any>>
      %c0_i32_17 = arith.constant 0 : i32
      %13 = tpu.memref_slice %arg7[%11, %c0_i32_17] : memref<8x32xf32, #tpu.memory_space<vmem>> -> memref<1x32xf32, #tpu.memory_space<vmem>>
      %14 = tpu.memref_slice %arg10[%11] : memref<8x!tpu.dma_semaphore, #tpu.memory_space<semaphore_mem>> -> memref<1x!tpu.dma_semaphore, #tpu.memory_space<semaphore_mem>>
      %15 = tpu.memref_squeeze %14 : memref<1x!tpu.dma_semaphore, #tpu.memory_space<semaphore_mem>> -> memref<!tpu.dma_semaphore, #tpu.memory_space<semaphore_mem>>
      tpu.wait_dma2 semaphore(%15 : memref<!tpu.dma_semaphore, #tpu.memory_space<semaphore_mem>>) src(%12 : memref<1x32xf32, #tpu.memory_space<any>>) dst(%13 : memref<1x32xf32, #tpu.memory_space<vmem>>)
      %c0_i32_18 = arith.constant 0 : i32
      %c0_i32_19 = arith.constant 0 : i32
      %16 = tpu.memref_slice %arg5[%c0_i32_18, %c0_i32_19] : memref<32x32xf32, #tpu.memory_space<any>> -> memref<1x32xf32, #tpu.memory_space<any>>
      %c0_i32_20 = arith.constant 0 : i32
      %17 = tpu.memref_slice %arg9[%11, %c0_i32_20] : memref<8x32xf32, #tpu.memory_space<vmem>> -> memref<1x32xf32, #tpu.memory_space<vmem>>
      %18 = tpu.memref_slice %arg12[%11] : memref<8x!tpu.dma_semaphore, #tpu.memory_space<semaphore_mem>> -> memref<1x!tpu.dma_semaphore, #tpu.memory_space<semaphore_mem>>
      %19 = tpu.memref_squeeze %18 : memref<1x!tpu.dma_semaphore, #tpu.memory_space<semaphore_mem>> -> memref<!tpu.dma_semaphore, #tpu.memory_space<semaphore_mem>>
      tpu.wait_dma2 semaphore(%19 : memref<!tpu.dma_semaphore, #tpu.memory_space<semaphore_mem>>) src(%16 : memref<1x32xf32, #tpu.memory_space<any>>) dst(%17 : memref<1x32xf32, #tpu.memory_space<vmem>>)
      %c0_i32_21 = arith.constant 0 : i32
      %c0_i32_22 = arith.constant 0 : i32
      %20 = tpu.memref_slice %arg4[%c0_i32_21, %c0_i32_22] : memref<2x32xf32, #tpu.memory_space<any>> -> memref<1x32xf32, #tpu.memory_space<any>>
      %c0_i32_23 = arith.constant 0 : i32
      %21 = tpu.memref_slice %arg8[%11, %c0_i32_23] : memref<8x32xf32, #tpu.memory_space<vmem>> -> memref<1x32xf32, #tpu.memory_space<vmem>>
      %22 = tpu.memref_slice %arg11[%11] : memref<8x!tpu.dma_semaphore, #tpu.memory_space<semaphore_mem>> -> memref<1x!tpu.dma_semaphore, #tpu.memory_space<semaphore_mem>>
      %23 = tpu.memref_squeeze %22 : memref<1x!tpu.dma_semaphore, #tpu.memory_space<semaphore_mem>> -> memref<!tpu.dma_semaphore, #tpu.memory_space<semaphore_mem>>
      tpu.wait_dma2 semaphore(%23 : memref<!tpu.dma_semaphore, #tpu.memory_space<semaphore_mem>>) src(%20 : memref<1x32xf32, #tpu.memory_space<any>>) dst(%21 : memref<1x32xf32, #tpu.memory_space<vmem>>)
    }
    %c8_i32_4 = arith.constant 8 : i32
    %c0 = arith.constant 0 : index
    %c0_5 = arith.constant 0 : index
    %2 = vector.load %arg7[%c0, %c0_5] : memref<8x32xf32, #tpu.memory_space<vmem>>, vector<8x32xf32>
    %c0_6 = arith.constant 0 : index
    %c0_7 = arith.constant 0 : index
    %3 = vector.load %arg8[%c0_6, %c0_7] : memref<8x32xf32, #tpu.memory_space<vmem>>, vector<8x32xf32>
    %4 = arith.addf %2, %3 : vector<8x32xf32>
    %c0_8 = arith.constant 0 : index
    %c0_9 = arith.constant 0 : index
    %5 = vector.load %arg9[%c0_8, %c0_9] : memref<8x32xf32, #tpu.memory_space<vmem>>, vector<8x32xf32>
    %6 = arith.addf %4, %5 : vector<8x32xf32>
    %c0_10 = arith.constant 0 : index
    %c0_11 = arith.constant 0 : index
    %c0_12 = arith.constant 0 : index
    %7 = vector.load %arg6[%c0_10, %c0_11, %c0_12] : memref<1x8x32xf32, #tpu.memory_space<vmem>>, vector<1x8x32xf32>
    %8 = vector.shape_cast %7 : vector<1x8x32xf32> to vector<8x32xf32>
    %9 = vector.shape_cast %6 : vector<8x32xf32> to vector<1x8x32xf32>
    tpu.vector_store %arg6[%c0_10, %c0_11, %c0_12], %9 {strides = array<i32>} : memref<1x8x32xf32, #tpu.memory_space<vmem>>, vector<1x8x32xf32>,
    return
  }
  func.func @transform_3(%arg0: i32, %arg1: memref<2x8xi32, #tpu.memory_space<smem>>, %arg2: memref<2x8xi32, #tpu.memory_space<smem>>) -> (i32, i32, i32) {
    %c0_i32 = arith.constant 0 : i32
    %c0_i32_0 = arith.constant 0 : i32
    %c0_i32_1 = arith.constant 0 : i32
    return %arg0, %c0_i32, %c0_i32_0 : i32, i32, i32
  }
}

</mosaic_0001>

<llo_original>
// kernel: tpu_custom_call.1
$region0: #{tpu_custom_call.1}
  #allocation0 [shape = 'u32[]', space=smem, size = 0x4, offset = 0x4, fixed_abs, tag = 'smem constant byte address 0x4 - core index']
  #allocation1 [shape = 'u32[144,128]{1,0:T(1,128)}', space=vmem, size = 0x12000, scoped, tag = 'internal scratch']
  #allocation2 [shape = 'f32[8,32]{1,0:T(8,128)}', space=vmem, size = 0x1000, scoped, tag = 'scratch operand']
  #allocation3 [shape = 'f32[8,32]{1,0:T(8,128)}', space=vmem, size = 0x1000, scoped, tag = 'scratch operand']
  #allocation4 [shape = 'f32[8,32]{1,0:T(8,128)}', space=vmem, size = 0x1000, scoped, tag = 'scratch operand']
  #allocation5 [shape = 's32[8]{0}', space=sflag, size = 0x20, scoped, tag = 'scratch operand']
  #allocation6 [shape = 's32[8]{0}', space=sflag, size = 0x20, scoped, tag = 'scratch operand']
  #allocation7 [shape = 's32[8]{0}', space=sflag, size = 0x20, scoped, tag = 'scratch operand']
  #allocation8 [shape = 's32[1]{0}', space=sflag, size = 0x4, scoped, tag = 'scoped memory for tpu_custom_call.1']
  #allocation9 [shape = 'u8[1024]{0}', space=smem, size = 0x400, scoped, tag = 'prefetched SMEM operand 0']
  #allocation10 [shape = 'u8[1024]{0}', space=smem, size = 0x400, scoped, tag = 'prefetched SMEM operand 1']
  #allocation13 [shape = 's32[]', space=sflag, size = 0x4, offset = 0, fixed_abs, tag = 'sflag constant byte address 0x0 - dummy sync flag']
  #allocation14 [shape = 's32[]', space=sflag, size = 0x4, offset = 0, fixed_abs, tag = 'sflag constant byte address 0x0 - dummy sync flag']
  #allocation15 [shape = 'u32[]', space=smem, size = 0x4, offset = 0x44, fixed_abs, tag = 'smem constant byte address 0x44 - assertion arg 0']
  #allocation16 [shape = 'u32[]', space=smem, size = 0x4, offset = 0x48, fixed_abs, tag = 'smem constant byte address 0x48 - assertion arg 1']
  #allocation17 [shape = 's32[]', space=sflag, size = 0x4, offset = 0, fixed_abs, tag = 'sflag constant byte address 0x0 - dummy sync flag']
  #allocation18 [shape = 's32[]', space=sflag, size = 0x4, offset = 0, fixed_abs, tag = 'sflag constant byte address 0x0 - dummy sync flag']
  #allocation19 [shape = 's32[]', space=sflag, size = 0x4, offset = 0, fixed_abs, tag = 'sflag constant byte address 0x0 - dummy sync flag']
  %s0 = inlined_call_operand.hbm [shape: s32[2,8], index: 0, kind: input, shape index: {}]
  %s1 = inlined_call_operand.vmem [shape: s32[2,8], index: 1, kind: input, shape index: {}]
  %s2 = inlined_call_operand.hbm [shape: f32[32,32], index: 2, kind: input, shape index: {}]
  %s3 = inlined_call_operand.vmem [shape: f32[2,32], index: 3, kind: input, shape index: {}]
  %s4 = inlined_call_operand.hbm [shape: f32[32,32], index: 4, kind: input, shape index: {}]
  %s5 = inlined_call_operand.hbm [shape: f32[2,8,32], index: 5, kind: output, shape index: {}]
  %s6 = sld [smem:[#allocation0]]
  $region77: #{tpu_custom_call.1} parent=0
    _
  %s8 = ssub.s32 1, %s6
  %s9 = scalar_select 0, %s8, %s6
  %11 = dma.hbm_to_smem %s0, 32, [#allocation9], [#allocation8]
  %s12 = sshll.u32 %s1, 4
  %s13 = int_to_ptr.vmem [resolvable:$true] %s12
  %15 = dma.vmem_to_smem %s13, 32, [#allocation10], [#allocation8]
  %16 = dma.done [#allocation8], 64
  %17 = sfence
  $region1: #{tpu_custom_call.1} parent=0
    #allocation11 [shape = 'u8[8192]{0}', space=vmem, size = 0x2000, scoped, tag = 'output window, operand 0']
    #allocation12 [shape = 's32[2]{0}', space=sflag, size = 0x8, scoped, tag = 'scoped memory for tpu_custom_call.1']
    %18 = vsyncpa [#allocation12], 0
    %s19 = scalar_lea.sflag [#allocation12], 1
    %20 = vsyncpa %s19, 0
    loop: start=0, step=1, limit=3
    $region2: #{tpu_custom_call.1} parent=1 // loop_pre_header
      _
    $region3: #{tpu_custom_call.1} parent=1 // loop_header
      %s22 = sphi 0, %s26
      %p23 = scmp.ge.s32.totalorder %s22, 3
      %s31 = sphi 0, %s33
      %s34 = sphi 0, %s31
      %s44 = sphi 0, %s34
    $region4: #{tpu_custom_call.1} parent=1 // loop_header_branch
      %25 = sbr.rel (%p23) target = $region8
    $region5: #{tpu_custom_call.1} parent=1 // loop_body
      %s27 = ssub.s32 %s22, 1
      %s28 = sadd.s32 %s22, 1
      %s29 = ssub.s32 %s22, %s28
      %p30 = scmp.eq.s32.totalorder %s29, 0
      %s32 = sadd.s32 %s31, 1
      %s33 = scalar_select %p30, %s31, %s32
      %p35 = pneg %p30
      %p36 = scmp.eq.s32.totalorder %s22, 1
      %p37 = por %p35, %p36
      %p38 = scmp.ne.s32.totalorder %s31, %s34
      %p39 = scmp.eq.s32.totalorder %s22, 0
      %p40 = por %p38, %p39
      %p41 = scmp.ne.s32.totalorder %s31, %s34
      %p42 = scmp.eq.s32.totalorder %s27, 1
      %p43 = por %p41, %p42
      %p45 = scmp.ne.s32.totalorder %s34, %s44
      %p46 = scmp.eq.s32.totalorder %s27, 0
      %p47 = por %p45, %p46
      %p48 = scmp.lt.s32.totalorder %s22, 2
      // Predicated region
      $region9: #{tpu_custom_call.1} parent=5 // pred_check
        %p49 = pneg %p48
      $region10: #{tpu_custom_call.1} parent=5 // pred_check_branch
        %51 = sbr.rel (%p49) target = $region12
      $region11: #{tpu_custom_call.1} parent=5 // pred_region
        %p52 = pneg %p40
        %p53 = pneg %p37
        %s54 = sand.u32 %s31, 1
        %s55 = scalar_lea.sflag [#allocation12], %s54
        %s56 = sand.u32 %s31, 1
        %s57 = smul.addr %s56, 8
        %s58 = scalar_lea.vmem [#allocation11], %s57
        loop: start=0, step=1, limit=8
        $region13: #{tpu_custom_call.1} parent=11 // loop_pre_header
          _
        $region14: #{tpu_custom_call.1} parent=11 // loop_header
          %s60 = sphi 0, %s64
          %p61 = scmp.ge.s32.totalorder %s60, 8
        $region15: #{tpu_custom_call.1} parent=11 // loop_header_branch
          %63 = sbr.rel (%p61) target = $region19
        $region16: #{tpu_custom_call.1} parent=11 // loop_body
          %s65 = sshra.s32 %s60, 7
          %s66 = sand.u32 %s60, 127
          %s67 = sadd.s32 %s65, %s22
          %s68 = smul.u32 %s67, 128
          %s69 = sshra.s32 %s60, 7
          %s70 = sand.u32 %s60, 127
          %s71 = sadd.s32 %s68, %s70
          %s72 = sld [smem:[#allocation9 + %s71]]
          %s73 = sld [smem:[#allocation10 + %s71]]
          %s74 = smul.addr %s72, 16
          %s75 = scalar_lea.hbm %s2, %s74
          %s76 = scalar_lea.vmem [#allocation2], %s60
          %s77 = scalar_lea.sflag [#allocation5], %s60
          // Predicated region
          $region20: #{tpu_custom_call.1} parent=16 // pred_check
            _
          $region21: #{tpu_custom_call.1} parent=16 // pred_check_branch
            %79 = sbr.rel target = $region23
          $region22: #{tpu_custom_call.1} parent=16 // pred_region
            %80 = sst [smem:[#allocation15]] [#allocation14]
            %81 = sst [smem:[#allocation16]] [#allocation13]
          $region23: #{tpu_custom_call.1} parent=16 // pred_fallthru
            _
          %83 = shalt.err (0)
          %s85 = sshll.u32 %s76, 4
          %s86 = int_to_ptr.vmem [resolvable:$true] %s85
          %88 = dma.hbm_to_vmem [thread:$0]  %s75, 16, %s86, %s77
          %s89 = smul.addr %s72, 16
          %s90 = scalar_lea.hbm %s4, %s89
          %s91 = scalar_lea.vmem [#allocation4], %s60
          %s92 = scalar_lea.sflag [#allocation7], %s60
          // Predicated region
          $region24: #{tpu_custom_call.1} parent=16 // pred_check
            _
          $region25: #{tpu_custom_call.1} parent=16 // pred_check_branch
            %94 = sbr.rel target = $region27
          $region26: #{tpu_custom_call.1} parent=16 // pred_region
            %95 = sst [smem:[#allocation15]] [#allocation18]
            %96 = sst [smem:[#allocation16]] [#allocation17]
          $region27: #{tpu_custom_call.1} parent=16 // pred_fallthru
            _
          %98 = shalt.err (0)
          %s100 = sshll.u32 %s91, 4
          %s101 = int_to_ptr.vmem [resolvable:$true] %s100
          %103 = dma.hbm_to_vmem [thread:$0]  %s90, 16, %s101, %s92
          %s104 = scalar_lea.vmem %s3, %s73
          %s105 = scalar_lea.vmem [#allocation3], %s60
          %s106 = scalar_lea.sflag [#allocation6], %s60
          %p108 = scmp.lt.u32.totalorder 1, 8
          %p109 = pneg %p108
          // Predicated region
          $region28: #{tpu_custom_call.1} parent=16 // pred_check
            _
          $region29: #{tpu_custom_call.1} parent=16 // pred_check_branch
            %111 = sbr.rel (%p108) target = $region31
          $region30: #{tpu_custom_call.1} parent=16 // pred_region
            %s126 = sand.u32 1, 7
            %p127 = scmp.eq.s32.totalorder %s126, 0
            %p128 = pneg %p127
            // Predicated region
            $region43: #{tpu_custom_call.1} parent=30 // pred_check
              _
            $region44: #{tpu_custom_call.1} parent=30 // pred_check_branch
              %130 = sbr.rel (%p127) target = $region46
            $region45: #{tpu_custom_call.1} parent=30 // pred_region
              %s131 = sand.u32 1, 7
              %s132 = ssub.s32 1, %s131
              %s133 = scalar_lea.vmem %s104, %s132
              %s134 = ssub.s32 1, %s131
              %s135 = scalar_lea.vmem %s105, %s134 [#allocation3]
              %s136 = sshllo.u32 0, %s131
              loop: start=0, step=1, limit=1
              $region47: #{tpu_custom_call.1} parent=45 // loop_pre_header
                _
              $region48: #{tpu_custom_call.1} parent=45 // loop_header
                %s138 = sphi 0, %s142
                %p139 = scmp.ge.s32.totalorder %s138, 1
                %s143 = sphi %s133, %s133
                %s144 = sphi %s135, %s135
              $region49: #{tpu_custom_call.1} parent=45 // loop_header_branch
                %141 = sbr.rel (%p139) target = $region53
              $region50: #{tpu_custom_call.1} parent=45 // loop_body
                %v145 = vld [vmem:[%s143] sm:%s136]
                %146 = vst [vmem:[%s144] sm:%s136] %v145
              $region51: #{tpu_custom_call.1} parent=45 // loop_footer
                %s142 = sadd.s32 1, %s138
              $region52: #{tpu_custom_call.1} parent=45 // loop_footer_branch
                %137 = sbr.rel target = $region48
              $region53: #{tpu_custom_call.1} parent=45 // loop_exit
                _
            $region46: #{tpu_custom_call.1} parent=30 // pred_fallthru
              _
          $region31: #{tpu_custom_call.1} parent=16 // pred_fallthru
            _
          // Predicated region
          $region32: #{tpu_custom_call.1} parent=16 // pred_check
            %p112 = pneg %p108
          $region33: #{tpu_custom_call.1} parent=16 // pred_check_branch
            %114 = sbr.rel (%p112) target = $region35
          $region34: #{tpu_custom_call.1} parent=16 // pred_region
            %s115 = sshllo.u32 0, 1
            loop: start=0, step=1, limit=1
            $region36: #{tpu_custom_call.1} parent=34 // loop_pre_header
              _
            $region37: #{tpu_custom_call.1} parent=34 // loop_header
              %s117 = sphi 0, %s121
              %p118 = scmp.ge.s32.totalorder %s117, 1
              %s122 = sphi %s104, %s104
              %s123 = sphi %s105, %s105
            $region38: #{tpu_custom_call.1} parent=34 // loop_header_branch
              %120 = sbr.rel (%p118) target = $region42
            $region39: #{tpu_custom_call.1} parent=34 // loop_body
              %v124 = vld [vmem:[%s122] sm:%s115]
              %125 = vst [vmem:[%s123] sm:%s115] %v124
            $region40: #{tpu_custom_call.1} parent=34 // loop_footer
              %s121 = sadd.s32 1, %s117
            $region41: #{tpu_custom_call.1} parent=34 // loop_footer_branch
              %116 = sbr.rel target = $region37
            $region42: #{tpu_custom_call.1} parent=34 // loop_exit
              _
          $region35: #{tpu_custom_call.1} parent=16 // pred_fallthru
            _
          // Predicated region
          $region54: #{tpu_custom_call.1} parent=16 // pred_check
            _
          $region55: #{tpu_custom_call.1} parent=16 // pred_check_branch
            %149 = sbr.rel (0) target = $region57
          $region56: #{tpu_custom_call.1} parent=16 // pred_region
            %150 = vsyncadd %s106, 16
          $region57: #{tpu_custom_call.1} parent=16 // pred_fallthru
            _
        $region17: #{tpu_custom_call.1} parent=11 // loop_footer
          %s64 = sadd.s32 1, %s60
        $region18: #{tpu_custom_call.1} parent=11 // loop_footer_branch
          %59 = sbr.rel target = $region14
        $region19: #{tpu_custom_call.1} parent=11 // loop_exit
          _
        loop: start=0, step=1, limit=8
        $region58: #{tpu_custom_call.1} parent=11 // loop_pre_header
          _
        $region59: #{tpu_custom_call.1} parent=11 // loop_header
          %s152 = sphi 0, %s156
          %p153 = scmp.ge.s32.totalorder %s152, 8
        $region60: #{tpu_custom_call.1} parent=11 // loop_header_branch
          %155 = sbr.rel (%p153) target = $region64
        $region61: #{tpu_custom_call.1} parent=11 // loop_body
          %s157 = scalar_lea.sflag [#allocation5], %s152
          %s158 = smul.u32 1, 1
          %s159 = sshll.u32 %s158, 4
          %160 = dma.done %s157, %s159
          %s161 = scalar_lea.sflag [#allocation7], %s152
          %s162 = sshll.u32 %s158, 4
          %163 = dma.done %s161, %s162
          %s164 = scalar_lea.sflag [#allocation6], %s152
          %s165 = sshll.u32 %s158, 4
          %166 = dma.done %s164, %s165
        $region62: #{tpu_custom_call.1} parent=11 // loop_footer
          %s156 = sadd.s32 1, %s152
        $region63: #{tpu_custom_call.1} parent=11 // loop_footer_branch
          %151 = sbr.rel target = $region59
        $region64: #{tpu_custom_call.1} parent=11 // loop_exit
          _
        %v167 = vld [vmem:[#allocation2] sm:$0xff]
        %v168 = vld [vmem:[#allocation3] sm:$0xff]
        %v169 = vadd.f32 %v167, %v168
        %v170 = vld [vmem:[#allocation4] sm:$0xff]
        %v171 = vadd.f32 %v169, %v170
        %vm172 = vcmask 261120
        %173 = vst.msk [vmem:[%s58] sm:$0xff] %vm172, %v171
        %s174 = sand.u32 %s31, 1
        %s175 = scalar_lea.sflag [#allocation12], %s174
        %s176 = sand.u32 %s31, 1
        %s177 = smul.addr %s176, 8
        %s178 = scalar_lea.vmem [#allocation11], %s177
        // Predicated region
        $region65: #{tpu_custom_call.1} parent=11 // pred_check
          %p179 = pneg %p37
        $region66: #{tpu_custom_call.1} parent=11 // pred_check_branch
          %181 = sbr.rel (%p179) target = $region68
        $region67: #{tpu_custom_call.1} parent=11 // pred_region
          %s183 = ssub.s32 128, 128
          %184 = vsyncadd %s175, %s183
          %s185 = smul.addr %s22, 128
          %s186 = scalar_lea.hbm %s5, %s185
          %s188 = sshll.u32 %s178, 4
          %s189 = int_to_ptr.vmem [resolvable:$true] %s188
          %191 = dma.vmem_to_hbm [thread:$0]  %s189, 128, %s186, %s175
        $region68: #{tpu_custom_call.1} parent=11 // pred_fallthru
          _
      $region12: #{tpu_custom_call.1} parent=5 // pred_fallthru
        _
      %p192 = scmp.le.s32.totalorder 1, %s22
      // Predicated region
      $region69: #{tpu_custom_call.1} parent=5 // pred_check
        %p193 = pneg %p192
      $region70: #{tpu_custom_call.1} parent=5 // pred_check_branch
        %195 = sbr.rel (%p193) target = $region72
      $region71: #{tpu_custom_call.1} parent=5 // pred_region
        %s196 = ssub.s32 %s22, 1
        // Predicated region
        $region73: #{tpu_custom_call.1} parent=71 // pred_check
          %p197 = pneg %p43
        $region74: #{tpu_custom_call.1} parent=71 // pred_check_branch
          %199 = sbr.rel (%p197) target = $region76
        $region75: #{tpu_custom_call.1} parent=71 // pred_region
          %s200 = sand.u32 %s34, 1
          %s201 = scalar_lea.sflag [#allocation12], %s200
          %s202 = sand.u32 %s34, 1
          %s203 = smul.addr %s202, 8
          %s204 = scalar_lea.vmem [#allocation11], %s203
          %205 = dma.done %s201, 128
        $region76: #{tpu_custom_call.1} parent=71 // pred_fallthru
          _
      $region72: #{tpu_custom_call.1} parent=5 // pred_fallthru
        _
    $region6: #{tpu_custom_call.1} parent=1 // loop_footer
      %s26 = sadd.s32 1, %s22
    $region7: #{tpu_custom_call.1} parent=1 // loop_footer_branch
      %21 = sbr.rel target = $region3
    $region8: #{tpu_custom_call.1} parent=1 // loop_exit
      _
    %206 = vsyncpa [#allocation12], 1
    %s207 = scalar_lea.sflag [#allocation12], 1
    %208 = vsyncpa %s207, 1
  %209 = vsyncmov [#allocation5]
  %s210 = vpop.sfrf %209
  %p211 = scmp.eq.s32.totalorder %s210, 0
  %p212 = pneg %p211
  %214 = shalt.err (%p212)
  %s215 = scalar_lea.sflag [#allocation5], 1
  %216 = vsyncmov %s215
  %s217 = vpop.sfrf %216
  %p218 = scmp.eq.s32.totalorder %s217, 0
  %p219 = pneg %p218
  %221 = shalt.err (%p219)
  %s222 = scalar_lea.sflag [#allocation5], 2
  %223 = vsyncmov %s222
  %s224 = vpop.sfrf %223
  %p225 = scmp.eq.s32.totalorder %s224, 0
  %p226 = pneg %p225
  %228 = shalt.err (%p226)
  %s229 = scalar_lea.sflag [#allocation5], 3
  %230 = vsyncmov %s229
  %s231 = vpop.sfrf %230
  %p232 = scmp.eq.s32.totalorder %s231, 0
  %p233 = pneg %p232
  %235 = shalt.err (%p233)
  %s236 = scalar_lea.sflag [#allocation5], 4
  %237 = vsyncmov %s236
  %s238 = vpop.sfrf %237
  %p239 = scmp.eq.s32.totalorder %s238, 0
  %p240 = pneg %p239
  %242 = shalt.err (%p240)
  %s243 = scalar_lea.sflag [#allocation5], 5
  %244 = vsyncmov %s243
  %s245 = vpop.sfrf %244
  %p246 = scmp.eq.s32.totalorder %s245, 0
  %p247 = pneg %p246
  %249 = shalt.err (%p247)
  %s250 = scalar_lea.sflag [#allocation5], 6
  %251 = vsyncmov %s250
  %s252 = vpop.sfrf %251
  %p253 = scmp.eq.s32.totalorder %s252, 0
  %p254 = pneg %p253
  %256 = shalt.err (%p254)
  %s257 = scalar_lea.sflag [#allocation5], 7
  %258 = vsyncmov %s257
  %s259 = vpop.sfrf %258
  %p260 = scmp.eq.s32.totalorder %s259, 0
  %p261 = pneg %p260
  %263 = shalt.err (%p261)
  %264 = vsyncmov [#allocation6]
  %s265 = vpop.sfrf %264
  %p266 = scmp.eq.s32.totalorder %s265, 0
  %p267 = pneg %p266
  %269 = shalt.err (%p267)
  %s270 = scalar_lea.sflag [#allocation6], 1
  %271 = vsyncmov %s270
  %s272 = vpop.sfrf %271
  %p273 = scmp.eq.s32.totalorder %s272, 0
  %p274 = pneg %p273
  %276 = shalt.err (%p274)
  %s277 = scalar_lea.sflag [#allocation6], 2
  %278 = vsyncmov %s277
  %s279 = vpop.sfrf %278
  %p280 = scmp.eq.s32.totalorder %s279, 0
  %p281 = pneg %p280
  %283 = shalt.err (%p281)
  %s284 = scalar_lea.sflag [#allocation6], 3
  %285 = vsyncmov %s284
  %s286 = vpop.sfrf %285
  %p287 = scmp.eq.s32.totalorder %s286, 0
  %p288 = pneg %p287
  %290 = shalt.err (%p288)
  %s291 = scalar_lea.sflag [#allocation6], 4
  %292 = vsyncmov %s291
  %s293 = vpop.sfrf %292
  %p294 = scmp.eq.s32.totalorder %s293, 0
  %p295 = pneg %p294
  %297 = shalt.err (%p295)
  %s298 = scalar_lea.sflag [#allocation6], 5
  %299 = vsyncmov %s298
  %s300 = vpop.sfrf %299
  %p301 = scmp.eq.s32.totalorder %s300, 0
  %p302 = pneg %p301
  %304 = shalt.err (%p302)
  %s305 = scalar_lea.sflag [#allocation6], 6
  %306 = vsyncmov %s305
  %s307 = vpop.sfrf %306
  %p308 = scmp.eq.s32.totalorder %s307, 0
  %p309 = pneg %p308
  %311 = shalt.err (%p309)
  %s312 = scalar_lea.sflag [#allocation6], 7
  %313 = vsyncmov %s312
  %s314 = vpop.sfrf %313
  %p315 = scmp.eq.s32.totalorder %s314, 0
  %p316 = pneg %p315
  %318 = shalt.err (%p316)
  %319 = vsyncmov [#allocation7]
  %s320 = vpop.sfrf %319
  %p321 = scmp.eq.s32.totalorder %s320, 0
  %p322 = pneg %p321
  %324 = shalt.err (%p322)
  %s325 = scalar_lea.sflag [#allocation7], 1
  %326 = vsyncmov %s325
  %s327 = vpop.sfrf %326
  %p328 = scmp.eq.s32.totalorder %s327, 0
  %p329 = pneg %p328
  %331 = shalt.err (%p329)
  %s332 = scalar_lea.sflag [#allocation7], 2
  %333 = vsyncmov %s332
  %s334 = vpop.sfrf %333
  %p335 = scmp.eq.s32.totalorder %s334, 0
  %p336 = pneg %p335
  %338 = shalt.err (%p336)
  %s339 = scalar_lea.sflag [#allocation7], 3
  %340 = vsyncmov %s339
  %s341 = vpop.sfrf %340
  %p342 = scmp.eq.s32.totalorder %s341, 0
  %p343 = pneg %p342
  %345 = shalt.err (%p343)
  %s346 = scalar_lea.sflag [#allocation7], 4
  %347 = vsyncmov %s346
  %s348 = vpop.sfrf %347
  %p349 = scmp.eq.s32.totalorder %s348, 0
  %p350 = pneg %p349
  %352 = shalt.err (%p350)
  %s353 = scalar_lea.sflag [#allocation7], 5
  %354 = vsyncmov %s353
  %s355 = vpop.sfrf %354
  %p356 = scmp.eq.s32.totalorder %s355, 0
  %p357 = pneg %p356
  %359 = shalt.err (%p357)
  %s360 = scalar_lea.sflag [#allocation7], 6
  %361 = vsyncmov %s360
  %s362 = vpop.sfrf %361
  %p363 = scmp.eq.s32.totalorder %s362, 0
  %p364 = pneg %p363
  %366 = shalt.err (%p364)
  %s367 = scalar_lea.sflag [#allocation7], 7
  %368 = vsyncmov %s367
  %s369 = vpop.sfrf %368
  %p370 = scmp.eq.s32.totalorder %s369, 0
  %p371 = pneg %p370
  %373 = shalt.err (%p371)

</llo_original>
